<compile_context>
chip_gen: v5e
topology: v5e:2x2
jax: 0.10.0
libtpu: 0.0.40
codegen_flags: <defaults>
</compile_context>

<pallas_src>
import math

import jax
import jax.numpy as jnp
from jax.experimental import pallas as pl
from jax.experimental.pallas import tpu as pltpu


_LANE = 128                      # vreg lane width
_SUBLANE = 8                     # f32 sublane count (conservative for budgeting)
_MAX_LANES_PER_BLOCK = 32 * 1024 # cap on lanes per block (lane-dense, unmasked vst)


def _round_up(x, m):
    return -(-x // m) * m


def _vmem_params():
    """(working-set budget, scoped vmem limit) — generation aware, safe defaults."""
    budget, limit = 16 << 20, 32 << 20        # safe on v7x (64 MiB physical VMEM/TC)
    try:
        dev = jax.devices()[0]
        kind = (getattr(dev, "device_kind", "") or "").lower()
        if dev.platform == "tpu" and ("v5" in kind or "v6" in kind):
            budget, limit = 24 << 20, 48 << 20  # 128 MiB physical VMEM
    except Exception:
        pass
    return budget, limit


def make_pe_buffer(d_model: int, max_len: int = 400, dtype=jnp.float32) -> jnp.ndarray:
    """Replicates PosEncoder2.__init__: pe buffer of shape [1, d_model, max_len].

    Stored pre-cast to the model dtype so the forward never pays a convert pass.
    """
    position = jnp.arange(0, max_len, dtype=jnp.float32)[:, None]             # [max_len, 1]
    div_term = jnp.exp(
        jnp.arange(0, d_model, 2, dtype=jnp.float32) * (-(math.log(10000.0) / d_model))
    )                                                                          # [ceil(d/2)]
    ang = position * div_term                                                  # [max_len, ceil(d/2)]
    pe = jnp.zeros((max_len, d_model), dtype=jnp.float32)
    pe = pe.at[:, 0::2].set(jnp.sin(ang))
    pe = pe.at[:, 1::2].set(jnp.cos(ang)[:, : d_model // 2])                   # guards odd d_model
    # unsqueeze(0).transpose(2, 1) -> [1, d_model, max_len]
    return pe[None].transpose(0, 2, 1).astype(dtype)


# ------------------------------ dropout helpers ------------------------------

def _hash_u32(z):
    # lowbias32 integer hash: counter -> well-mixed 32 bits.  Pure VPU int ops,
    # so it lowers on TPU hardware and in interpret mode alike.
    z = (z ^ (z >> 16)) * jnp.uint32(0x7FEB352D)
    z = (z ^ (z >> 15)) * jnp.uint32(0x846CA68B)
    return z ^ (z >> 16)


def _apply_dropout(y, global_idx_i32, seed_i32, dropout_rate):
    """Inverted dropout.  Integer-domain keep test: top-23 hash bits vs threshold."""
    threshold = int(round(float(dropout_rate) * (1 << 23)))
    z = global_idx_i32.astype(jnp.uint32) + seed_i32.astype(jnp.uint32) * jnp.uint32(0x9E3779B9)
    r = (_hash_u32(z) >> 9).astype(jnp.int32)          # 23 uniform bits, non-negative
    keep = r >= jnp.int32(threshold)
    # NOTE: scale cast to the input dtype keeps bf16 packed; introduces a ~0.1%
    # rounding of 1/(1-p) in bf16.  TODO(synk): apply scale in f32 if bf16
    # training fidelity matters more than the extra upcast.
    scale = jnp.asarray(1.0 / (1.0 - float(dropout_rate)), dtype=y.dtype)
    return jnp.where(keep, y * scale, jnp.zeros((), dtype=y.dtype))


# --------------------------------- kernels -----------------------------------

def _make_kernel_3d(dropout_rate, apply_dropout, *, D, S, seq_tile):
    def kernel(seed_ref, x_ref, pe_ref, o_ref):
        y = x_ref[...] + pe_ref[...]                       # stays in the input dtype
        if apply_dropout:
            s_blk = pl.program_id(0)
            b = pl.program_id(1)
            shape = y.shape                                # (1, D, seq_tile)
            d_idx = jax.lax.broadcasted_iota(jnp.int32, shape, 1)
            s_idx = jax.lax.broadcasted_iota(jnp.int32, shape, 2)
            gidx = (b * D + d_idx) * S + (s_blk * seq_tile + s_idx)
            y = _apply_dropout(y, gidx, seed_ref[0], dropout_rate)
        o_ref[...] = y.astype(o_ref.dtype)
    return kernel


def _make_kernel_flat(dropout_rate, apply_dropout, *, n, tile):
    def kernel(seed_ref, x_ref, pe_ref, o_ref):
        y = x_ref[...] + pe_ref[...]                       # (B, tile) + (1, tile) broadcast
        if apply_dropout:
            i = pl.program_id(0)
            shape = y.shape                                # (B, tile)
            row = jax.lax.broadcasted_iota(jnp.int32, shape, 0)
            col = jax.lax.broadcasted_iota(jnp.int32, shape, 1)
            gidx = row * n + (i * tile + col)
            y = _apply_dropout(y, gidx, seed_ref[0], dropout_rate)
        o_ref[...] = y.astype(o_ref.dtype)
    return kernel


# --------------------------------- wrappers ----------------------------------

def _forward_3d(x, pe, dropout_rate, apply_dropout, seed_arr):
    """Lane-aligned path (S % 128 == 0): keep [B, D, S], tile the seq axis."""
    B, D, S = x.shape
    itemsize = jnp.dtype(x.dtype).itemsize
    budget, limit = _vmem_params()
    d_pad = _round_up(D, _SUBLANE)

    # Budget covers double-buffered x, pe, out blocks: 6 * (d_pad * seq_tile).
    max_st = budget // (6 * d_pad * itemsize)
    seq_tile = max(_LANE, (min(max_st, _MAX_LANES_PER_BLOCK) // _LANE) * _LANE)
    seq_tile = min(seq_tile, S)                           # S is a multiple of 128 here
    if B == 1 and S >= 2 * _LANE:                         # >=2 grid steps for v7x megacore
        seq_tile = min(seq_tile, _round_up(S // 2, _LANE))

    # seq OUTER, batch INNER: each pe tile is DMA'd once, reused for all batches.
    grid = (pl.cdiv(S, seq_tile), B)

    kernel = _make_kernel_3d(dropout_rate, apply_dropout, D=D, S=S, seq_tile=seq_tile)

    return pl.pallas_call(
        kernel,
        out_shape=jax.ShapeDtypeStruct((B, D, S), x.dtype),
        grid_spec=pltpu.PrefetchScalarGridSpec(
            num_scalar_prefetch=1,
            grid=grid,
            in_specs=[
                pl.BlockSpec((1, D, seq_tile), lambda s, b, seed: (b, 0, s)),
                pl.BlockSpec((1, D, seq_tile), lambda s, b, seed: (0, 0, s)),  # batch-indep.
            ],
            out_specs=pl.BlockSpec((1, D, seq_tile), lambda s, b, seed: (b, 0, s)),
        ),
        compiler_params=pltpu.CompilerParams(
            dimension_semantics=("parallel", "parallel"),
            vmem_limit_bytes=limit,
        ),
    )(seed_arr, x, pe)


def _forward_flat(x, pe_flat, dropout_rate, apply_dropout, seed_arr):
    """Fallback for small / non-128-multiple seq_len: collapse (D, S) -> D*S so the
    lane axis is dense instead of a masked S-wide store.  pe_flat is precomputed."""
    B, D, S = x.shape
    n = D * S
    itemsize = jnp.dtype(x.dtype).itemsize
    budget, limit = _vmem_params()
    b_pad = _round_up(B, _SUBLANE)

    x2 = x.reshape(B, n)                                   # contiguous view: free

    max_t = budget // ((4 * b_pad + 2 * _SUBLANE) * itemsize)
    max_t = max(_LANE, min(max_t, _MAX_LANES_PER_BLOCK))
    if n <= max_t:
        tile = n                                           # full flat dim (always legal)
        if n >= 2 * _LANE:                                 # >=2 grid steps for v7x megacore
            tile = _round_up(pl.cdiv(n, 2), _LANE)
    else:
        tile = (max_t // _LANE) * _LANE                    # 128-multiple; edge block masked

    grid = (pl.cdiv(n, tile),)
    kernel = _make_kernel_flat(dropout_rate, apply_dropout, n=n, tile=tile)

    out = pl.pallas_call(
        kernel,
        out_shape=jax.ShapeDtypeStruct((B, n), x.dtype),
        grid_spec=pltpu.PrefetchScalarGridSpec(
            num_scalar_prefetch=1,
            grid=grid,
            in_specs=[
                pl.BlockSpec((B, tile), lambda i, seed: (0, i)),
                pl.BlockSpec((1, tile), lambda i, seed: (0, i)),  # broadcast over batch
            ],
            out_specs=pl.BlockSpec((B, tile), lambda i, seed: (0, i)),
        ),
        compiler_params=pltpu.CompilerParams(
            dimension_semantics=("parallel",),
            vmem_limit_bytes=limit,
        ),
    )(seed_arr, x2, pe_flat)
    return out.reshape(B, D, S)


class PosEncoder2:
    """JAX/Pallas equivalent of the PyTorch PosEncoder2 module.

    forward: dropout(x + pe[:, :, :seq_len]) with x of shape [batch, d_model, seq_len].
    Eval mode (training=False) makes dropout the identity, matching nn.Dropout.
    """

    def __init__(self, d_model, dropout, max_len=400, dtype=jnp.float32):
        self.d_model = int(d_model)
        self.max_len = int(max_len)
        self.dropout_rate = float(dropout)
        self.pe = make_pe_buffer(self.d_model, self.max_len, dtype)   # [1, d_model, max_len]
        self._pe_flat_cache = {}                                       # (S, dtype) -> [1, d_model*S]

    def _pe_flat(self, S, dtype):
        key = (int(S), jnp.dtype(dtype).name)
        if key not in self._pe_flat_cache:
            pe = self.pe if self.pe.dtype == dtype else self.pe.astype(dtype)
            self._pe_flat_cache[key] = jax.lax.slice_in_dim(pe, 0, S, axis=2).reshape(
                1, self.d_model * S)
        return self._pe_flat_cache[key]

    def __call__(self, x, *, training=False, seed=0):
        B, D, S = x.shape
        assert D == self.d_model and S <= self.max_len
        apply_dropout = bool(training) and self.dropout_rate > 0.0
        seed_arr = jnp.full((1,), seed, dtype=jnp.int32)
        if S % _LANE == 0:
            pe = self.pe if self.pe.dtype == x.dtype else self.pe.astype(x.dtype)
            return _forward_3d(x, pe, self.dropout_rate, apply_dropout, seed_arr)
        return _forward_flat(x, self._pe_flat(S, x.dtype), self.dropout_rate,
                             apply_dropout, seed_arr)


if __name__ == "__main__":
    batch, d_model, seq_len = 2, 32, 16
    max_len = 400
    p = 0.1

    key = jax.random.PRNGKey(0)
    x = jax.random.normal(key, (batch, d_model, seq_len), dtype=jnp.float32)

    enc = PosEncoder2(d_model, dropout=p, max_len=max_len, dtype=jnp.float32)
    pe = enc.pe

    # --- eval mode (dropout = identity): exact check, small unaligned S -> flat path ---
    out = jax.block_until_ready(enc(x, training=False))
    ref = x + pe[:, :, :seq_len]
    assert out.shape == (batch, d_model, seq_len)
    assert jnp.allclose(out, ref, atol=1e-6, rtol=1e-6)

    # --- eval mode on a lane-aligned seq_len: exercises the tiled 3D path ---
    seq2 = 256
    x2 = jax.random.normal(jax.random.PRNGKey(1), (batch, d_model, seq2), dtype=jnp.float32)
    out2 = jax.block_until_ready(enc(x2, training=False))
    ref2 = x2 + pe[:, :, :seq2]
    assert jnp.allclose(out2, ref2, atol=1e-6, rtol=1e-6)

    # --- training mode (flat path): inverted dropout; kept entries == ref / (1 - p) ---
    out_t = jax.block_until_ready(enc(x, training=True, seed=1234))
    kept = out_t != 0.0
    scaled_ok = jnp.abs(out_t * (1.0 - p) - ref) <= 1e-5 + 1e-5 * jnp.abs(ref)
    assert bool(jnp.all(jnp.where(kept, scaled_ok, True)))
    drop_frac = 1.0 - float(jnp.mean(kept.astype(jnp.float32)))
    assert 0.0 < drop_frac < 0.5, drop_frac

    # --- training mode (lane-aligned 3D path) ---
    out_t2 = jax.block_until_ready(enc(x2, training=True, seed=7))
    kept2 = out_t2 != 0.0
    scaled_ok2 = jnp.abs(out_t2 * (1.0 - p) - ref2) <= 1e-5 + 1e-5 * jnp.abs(ref2)
    assert bool(jnp.all(jnp.where(kept2, scaled_ok2, True)))
    drop_frac2 = 1.0 - float(jnp.mean(kept2.astype(jnp.float32)))
    assert 0.0 < drop_frac2 < 0.5, drop_frac2

    print("KERNEL_OK")
</pallas_src>

<mosaic_0001>
module attributes {stable_mosaic.version = 11 : i64} {
  func.func @kernel(%arg0: i32, %arg1: memref<1xi32, #tpu.memory_space<smem>>, %arg2: memref<2x256xf32, #tpu.memory_space<vmem>>, %arg3: memref<1x256xf32, #tpu.memory_space<vmem>>, %arg4: memref<2x256xf32, #tpu.memory_space<vmem>>) attributes {dimension_semantics = [#tpu.dimension_semantics<parallel>], iteration_bounds = array<i64: 2>, scalar_prefetch = 1 : i64, scratch_operands = 0 : i64, tpu.core_type = #tpu.core_type<tc>, window_params = [{transform_indices = @transform_0, window_bounds = array<i64: 2, 256>}, {transform_indices = @transform_1, window_bounds = array<i64: 1, 256>}, {transform_indices = @transform_2, window_bounds = array<i64: 2, 256>}]} {
    %c0 = arith.constant 0 : index
    %c0_0 = arith.constant 0 : index
    %0 = vector.load %arg2[%c0, %c0_0] : memref<2x256xf32, #tpu.memory_space<vmem>>, vector<2x256xf32>
    %c0_1 = arith.constant 0 : index
    %c0_2 = arith.constant 0 : index
    %1 = vector.load %arg3[%c0_1, %c0_2] : memref<1x256xf32, #tpu.memory_space<vmem>>, vector<1x256xf32>
    %2 = vector.broadcast %1 : vector<1x256xf32> to vector<2x256xf32>
    %3 = arith.addf %0, %2 : vector<2x256xf32>
    %c0_3 = arith.constant 0 : index
    %c0_4 = arith.constant 0 : index
    %4 = vector.load %arg4[%c0_3, %c0_4] : memref<2x256xf32, #tpu.memory_space<vmem>>, vector<2x256xf32>
    tpu.vector_store %arg4[%c0_3, %c0_4], %3 {strides = array<i32>} : memref<2x256xf32, #tpu.memory_space<vmem>>, vector<2x256xf32>,
    return
  }
  func.func @transform_0(%arg0: i32, %arg1: memref<1xi32, #tpu.memory_space<smem>>) -> (i32, i32) {
    %c0_i32 = arith.constant 0 : i32
    %c0_i32_0 = arith.constant 0 : i32
    return %c0_i32, %arg0 : i32, i32
  }
  func.func @transform_1(%arg0: i32, %arg1: memref<1xi32, #tpu.memory_space<smem>>) -> (i32, i32) {
    %c0_i32 = arith.constant 0 : i32
    %c0_i32_0 = arith.constant 0 : i32
    return %c0_i32, %arg0 : i32, i32
  }
  func.func @transform_2(%arg0: i32, %arg1: memref<1xi32, #tpu.memory_space<smem>>) -> (i32, i32) {
    %c0_i32 = arith.constant 0 : i32
    %c0_i32_0 = arith.constant 0 : i32
    return %c0_i32, %arg0 : i32, i32
  }
}

</mosaic_0001>

<llo_original>
// kernel: tpu_custom_call.1
$region0: #{tpu_custom_call.1}
  #allocation0 [shape = 'u32[]', space=smem, size = 0x4, offset = 0x4, fixed_abs, tag = 'smem constant byte address 0x4 - core index']
  #allocation1 [shape = 'u32[72,128]{1,0:T(1,128)}', space=vmem, size = 0x9000, scoped, tag = 'internal scratch']
  #allocation2 [shape = 's32[1]{0}', space=sflag, size = 0x4, scoped, tag = 'scoped memory for tpu_custom_call.1']
  #allocation3 [shape = 's32[1]{0:T(128)S(6)}', space=smem, size = 0x200, scoped, tag = 'prefetched SMEM operand 0']
  %s0 = inlined_call_operand.<no memory space> [shape: s32[1], index: 0, kind: input, shape index: {}]
  %s1 = inlined_call_operand.hbm [shape: f32[2,512], index: 1, kind: input, shape index: {}]
  %s2 = inlined_call_operand.hbm [shape: f32[1,512], index: 2, kind: input, shape index: {}]
  %s3 = inlined_call_operand.hbm [shape: f32[2,512], index: 3, kind: output, shape index: {}]
  %s4 = sld [smem:[#allocation0]]
  $region49: #{tpu_custom_call.1} parent=0
    _
  %s6 = ssub.s32 1, %s4
  %s7 = scalar_select 0, %s6, %s4
  %8 = sst [smem:[#allocation3]] %s0
  $region1: #{tpu_custom_call.1} parent=0
    #allocation4 [shape = 'u8[4096]{0}', space=vmem, size = 0x1000, scoped, tag = 'input window, operand 1']
    #allocation5 [shape = 's32[2]{0}', space=sflag, size = 0x8, scoped, tag = 'scoped memory for tpu_custom_call.1']
    #allocation6 [shape = 's32[2]{0}', space=sflag, size = 0x8, scoped, tag = 'scoped memory for tpu_custom_call.1']
    #allocation7 [shape = 'u8[2048]{0}', space=vmem, size = 0x800, scoped, tag = 'input window, operand 2']
    #allocation8 [shape = 's32[2]{0}', space=sflag, size = 0x8, scoped, tag = 'scoped memory for tpu_custom_call.1']
    #allocation9 [shape = 'u8[4096]{0}', space=vmem, size = 0x1000, scoped, tag = 'output window, operand 0']
    %9 = vsyncpa [#allocation5], 0
    %s10 = scalar_lea.sflag [#allocation5], 1
    %11 = vsyncpa %s10, 0
    %12 = vsyncpa [#allocation8], 0
    %s13 = scalar_lea.sflag [#allocation8], 1
    %14 = vsyncpa %s13, 0
    %15 = vsyncpa [#allocation6], 0
    %s16 = scalar_lea.sflag [#allocation6], 1
    %17 = vsyncpa %s16, 0
    loop: start=0, step=1, limit=4
    $region2: #{tpu_custom_call.1} parent=1 // loop_pre_header
      _
    $region3: #{tpu_custom_call.1} parent=1 // loop_header
      %s19 = sphi 0, %s23
      %p20 = scmp.ge.s32.totalorder %s19, 4
      %s29 = sphi 0, %s31
      %s32 = sphi 0, %s29
      %s33 = sphi 0, %s32
      %s49 = sphi 0, %s33
      %s55 = sphi 0, %s57
      %s58 = sphi 0, %s55
      %s59 = sphi 0, %s58
      %s75 = sphi 0, %s59
      %s81 = sphi 0, %s83
      %s84 = sphi 0, %s81
      %s85 = sphi 0, %s84
      %s101 = sphi 0, %s85
    $region4: #{tpu_custom_call.1} parent=1 // loop_header_branch
      %22 = sbr.rel (%p20) target = $region8
    $region5: #{tpu_custom_call.1} parent=1 // loop_body
      %s24 = ssub.s32 %s19, 1
      %s25 = ssub.s32 %s19, 2
      %s26 = sadd.s32 %s19, 1
      %s27 = ssub.s32 %s19, %s26
      %p28 = scmp.eq.s32.totalorder %s27, 0
      %s30 = sadd.s32 %s29, 1
      %s31 = scalar_select %p28, %s29, %s30
      %p34 = pneg %p28
      %p35 = scmp.eq.s32.totalorder %s19, 1
      %p36 = por %p34, %p35
      %p37 = scmp.ne.s32.totalorder %s29, %s32
      %p38 = scmp.eq.s32.totalorder %s19, 0
      %p39 = por %p37, %p38
      %p40 = scmp.ne.s32.totalorder %s29, %s32
      %p41 = scmp.eq.s32.totalorder %s24, 1
      %p42 = por %p40, %p41
      %p43 = scmp.ne.s32.totalorder %s32, %s33
      %p44 = scmp.eq.s32.totalorder %s24, 0
      %p45 = por %p43, %p44
      %p46 = scmp.ne.s32.totalorder %s32, %s33
      %p47 = scmp.eq.s32.totalorder %s25, 1
      %p48 = por %p46, %p47
      %p50 = scmp.ne.s32.totalorder %s33, %s49
      %p51 = scmp.eq.s32.totalorder %s25, 0
      %p52 = por %p50, %p51
      %s53 = ssub.s32 %s19, %s26
      %p54 = scmp.eq.s32.totalorder %s53, 0
      %s56 = sadd.s32 %s55, 1
      %s57 = scalar_select %p54, %s55, %s56
      %p60 = pneg %p54
      %p61 = scmp.eq.s32.totalorder %s19, 1
      %p62 = por %p60, %p61
      %p63 = scmp.ne.s32.totalorder %s55, %s58
      %p64 = scmp.eq.s32.totalorder %s19, 0
      %p65 = por %p63, %p64
      %p66 = scmp.ne.s32.totalorder %s55, %s58
      %p67 = scmp.eq.s32.totalorder %s24, 1
      %p68 = por %p66, %p67
      %p69 = scmp.ne.s32.totalorder %s58, %s59
      %p70 = scmp.eq.s32.totalorder %s24, 0
      %p71 = por %p69, %p70
      %p72 = scmp.ne.s32.totalorder %s58, %s59
      %p73 = scmp.eq.s32.totalorder %s25, 1
      %p74 = por %p72, %p73
      %p76 = scmp.ne.s32.totalorder %s59, %s75
      %p77 = scmp.eq.s32.totalorder %s25, 0
      %p78 = por %p76, %p77
      %s79 = ssub.s32 %s19, %s26
      %p80 = scmp.eq.s32.totalorder %s79, 0
      %s82 = sadd.s32 %s81, 1
      %s83 = scalar_select %p80, %s81, %s82
      %p86 = pneg %p80
      %p87 = scmp.eq.s32.totalorder %s19, 1
      %p88 = por %p86, %p87
      %p89 = scmp.ne.s32.totalorder %s81, %s84
      %p90 = scmp.eq.s32.totalorder %s19, 0
      %p91 = por %p89, %p90
      %p92 = scmp.ne.s32.totalorder %s81, %s84
      %p93 = scmp.eq.s32.totalorder %s24, 1
      %p94 = por %p92, %p93
      %p95 = scmp.ne.s32.totalorder %s84, %s85
      %p96 = scmp.eq.s32.totalorder %s24, 0
      %p97 = por %p95, %p96
      %p98 = scmp.ne.s32.totalorder %s84, %s85
      %p99 = scmp.eq.s32.totalorder %s25, 1
      %p100 = por %p98, %p99
      %p102 = scmp.ne.s32.totalorder %s85, %s101
      %p103 = scmp.eq.s32.totalorder %s25, 0
      %p104 = por %p102, %p103
      %p105 = scmp.le.s32.totalorder 1, %s19
      %p106 = scmp.lt.s32.totalorder %s19, 3
      %p107 = pnand %p105, %p106
      %p108 = pneg %p107
      // Predicated region
      $region9: #{tpu_custom_call.1} parent=5 // pred_check
        _
      $region10: #{tpu_custom_call.1} parent=5 // pred_check_branch
        %110 = sbr.rel (%p107) target = $region12
      $region11: #{tpu_custom_call.1} parent=5 // pred_region
        %s111 = ssub.s32 %s19, 1
      $region12: #{tpu_custom_call.1} parent=5 // pred_fallthru
        _
      %p112 = scmp.lt.s32.totalorder %s19, 2
      // Predicated region
      $region13: #{tpu_custom_call.1} parent=5 // pred_check
        %p113 = pneg %p112
      $region14: #{tpu_custom_call.1} parent=5 // pred_check_branch
        %115 = sbr.rel (%p113) target = $region16
      $region15: #{tpu_custom_call.1} parent=5 // pred_region
        // Predicated region
        $region17: #{tpu_custom_call.1} parent=15 // pred_check
          %p116 = pneg %p39
        $region18: #{tpu_custom_call.1} parent=15 // pred_check_branch
          %118 = sbr.rel (%p116) target = $region20
        $region19: #{tpu_custom_call.1} parent=15 // pred_region
          %s119 = sand.u32 %s29, 1
          %s120 = scalar_lea.sflag [#allocation5], %s119
          %s121 = sand.u32 %s29, 1
          %s122 = smul.addr %s121, 4
          %s123 = scalar_lea.vmem [#allocation4], %s122
          %s124 = smul.u32 2, %s19
          %126 = vsyncadd %s120, 0
          %s127 = smul.addr %s124, 2
          %s128 = scalar_lea.hbm %s1, %s127
          %s130 = sshll.u32 %s128, 4
          %s131 = int_to_ptr.hbm [resolvable:$true] %s130
          %s132 = sshll.u32 %s123, 4
          %s133 = int_to_ptr.vmem [resolvable:$true] %s132
          %135 = dma.hbm_to_vmem [thread:$0]  %s131, 64, %s133, %s120
        $region20: #{tpu_custom_call.1} parent=15 // pred_fallthru
          _
        // Predicated region
        $region21: #{tpu_custom_call.1} parent=15 // pred_check
          %p136 = pneg %p65
        $region22: #{tpu_custom_call.1} parent=15 // pred_check_branch
          %138 = sbr.rel (%p136) target = $region24
        $region23: #{tpu_custom_call.1} parent=15 // pred_region
          %s139 = sand.u32 %s55, 1
          %s140 = scalar_lea.sflag [#allocation8], %s139
          %s141 = sand.u32 %s55, 1
          %s142 = smul.addr %s141, 2
          %s143 = scalar_lea.vmem [#allocation7], %s142
          %s144 = smul.u32 2, %s19
          %146 = vsyncadd %s140, 0
          %s147 = scalar_lea.hbm %s2, %s144
          %s149 = sshll.u32 %s147, 4
          %s150 = int_to_ptr.hbm [resolvable:$true] %s149
          %s151 = sshll.u32 %s143, 4
          %s152 = int_to_ptr.vmem [resolvable:$true] %s151
          %154 = dma.hbm_to_vmem [thread:$0]  %s150, 32, %s152, %s140
        $region24: #{tpu_custom_call.1} parent=15 // pred_fallthru
          _
      $region16: #{tpu_custom_call.1} parent=5 // pred_fallthru
        _
      %p155 = scmp.le.s32.totalorder 1, %s19
      %p156 = scmp.lt.s32.totalorder %s19, 3
      %p157 = pnand %p155, %p156
      %p158 = pneg %p157
      // Predicated region
      $region25: #{tpu_custom_call.1} parent=5 // pred_check
        _
      $region26: #{tpu_custom_call.1} parent=5 // pred_check_branch
        %160 = sbr.rel (%p157) target = $region28
      $region27: #{tpu_custom_call.1} parent=5 // pred_region
        %s161 = ssub.s32 %s19, 1
        %s162 = sand.u32 %s32, 1
        %s163 = scalar_lea.sflag [#allocation5], %s162
        %s164 = sand.u32 %s32, 1
        %s165 = smul.addr %s164, 4
        %s166 = scalar_lea.vmem [#allocation4], %s165
        // Predicated region
        $region29: #{tpu_custom_call.1} parent=27 // pred_check
          %p167 = pneg %p45
        $region30: #{tpu_custom_call.1} parent=27 // pred_check_branch
          %169 = sbr.rel (%p167) target = $region32
        $region31: #{tpu_custom_call.1} parent=27 // pred_region
          %171 = dma.done %s163, 64
        $region32: #{tpu_custom_call.1} parent=27 // pred_fallthru
          _
        %s172 = sand.u32 %s58, 1
        %s173 = scalar_lea.sflag [#allocation8], %s172
        %s174 = sand.u32 %s58, 1
        %s175 = smul.addr %s174, 2
        %s176 = scalar_lea.vmem [#allocation7], %s175
        // Predicated region
        $region33: #{tpu_custom_call.1} parent=27 // pred_check
          %p177 = pneg %p71
        $region34: #{tpu_custom_call.1} parent=27 // pred_check_branch
          %179 = sbr.rel (%p177) target = $region36
        $region35: #{tpu_custom_call.1} parent=27 // pred_region
          %181 = dma.done %s173, 32
        $region36: #{tpu_custom_call.1} parent=27 // pred_fallthru
          _
        %s182 = sand.u32 %s32, 1
        %s183 = scalar_lea.sflag [#allocation5], %s182
        %s184 = sand.u32 %s32, 1
        %s185 = smul.addr %s184, 4
        %s186 = scalar_lea.vmem [#allocation4], %s185
        %p187 = pneg %p45
        %p188 = pneg %p42
        %s189 = sand.u32 %s58, 1
        %s190 = scalar_lea.sflag [#allocation8], %s189
        %s191 = sand.u32 %s58, 1
        %s192 = smul.addr %s191, 2
        %s193 = scalar_lea.vmem [#allocation7], %s192
        %p194 = pneg %p71
        %p195 = pneg %p68
        %p196 = pneg %p97
        %p197 = pneg %p94
        %s198 = sand.u32 %s84, 1
        %s199 = scalar_lea.sflag [#allocation6], %s198
        %s200 = sand.u32 %s84, 1
        %s201 = smul.addr %s200, 4
        %s202 = scalar_lea.vmem [#allocation9], %s201
        %s203 = smul.u32 2, %s24
        %s204 = smul.u32 2, %s24
        %s205 = smul.u32 2, %s24
        %v206 = vld [vmem:[%s166] sm:$0xf]
        %v207 = vld [vmem:[%s176] sm:$0x3]
        %v209 = vperm.slane %v207, 0
        %v210 = vperm.slane %v207, 1
        %v211 = vrot.slane %v210, 6
        %vm212 = vcmask 1041408
        %v213 = vsel %vm212, %v209, %v211
        %v215 = vadd.f32 %v206, %v213
        %216 = vst [vmem:[%s202] sm:$0xf] %v215
        %s217 = sand.u32 %s84, 1
        %s218 = scalar_lea.sflag [#allocation6], %s217
        %s219 = sand.u32 %s84, 1
        %s220 = smul.addr %s219, 4
        %s221 = scalar_lea.vmem [#allocation9], %s220
        // Predicated region
        $region37: #{tpu_custom_call.1} parent=27 // pred_check
          %p222 = pneg %p94
        $region38: #{tpu_custom_call.1} parent=27 // pred_check_branch
          %224 = sbr.rel (%p222) target = $region40
        $region39: #{tpu_custom_call.1} parent=27 // pred_region
          %s225 = smul.u32 2, %s24
          %227 = vsyncadd %s218, 0
          %s228 = smul.addr %s225, 2
          %s229 = scalar_lea.hbm %s3, %s228
          %s231 = sshll.u32 %s221, 4
          %s232 = int_to_ptr.vmem [resolvable:$true] %s231
          %s233 = sshll.u32 %s229, 4
          %s234 = int_to_ptr.hbm [resolvable:$true] %s233
          %236 = dma.vmem_to_hbm [thread:$0]  %s232, 64, %s234, %s218
        $region40: #{tpu_custom_call.1} parent=27 // pred_fallthru
          _
      $region28: #{tpu_custom_call.1} parent=5 // pred_fallthru
        _
      %p237 = scmp.le.s32.totalorder 2, %s19
      // Predicated region
      $region41: #{tpu_custom_call.1} parent=5 // pred_check
        %p238 = pneg %p237
      $region42: #{tpu_custom_call.1} parent=5 // pred_check_branch
        %240 = sbr.rel (%p238) target = $region44
      $region43: #{tpu_custom_call.1} parent=5 // pred_region
        %s241 = ssub.s32 %s19, 2
        // Predicated region
        $region45: #{tpu_custom_call.1} parent=43 // pred_check
          %p242 = pneg %p100
        $region46: #{tpu_custom_call.1} parent=43 // pred_check_branch
          %244 = sbr.rel (%p242) target = $region48
        $region47: #{tpu_custom_call.1} parent=43 // pred_region
          %s245 = sand.u32 %s85, 1
          %s246 = scalar_lea.sflag [#allocation6], %s245
          %s247 = sand.u32 %s85, 1
          %s248 = smul.addr %s247, 4
          %s249 = scalar_lea.vmem [#allocation9], %s248
          %251 = dma.done %s246, 64
        $region48: #{tpu_custom_call.1} parent=43 // pred_fallthru
          _
      $region44: #{tpu_custom_call.1} parent=5 // pred_fallthru
        _
    $region6: #{tpu_custom_call.1} parent=1 // loop_footer
      %s23 = sadd.s32 1, %s19
    $region7: #{tpu_custom_call.1} parent=1 // loop_footer_branch
      %18 = sbr.rel target = $region3
    $region8: #{tpu_custom_call.1} parent=1 // loop_exit
      _
    %252 = vsyncpa [#allocation5], 1
    %s253 = scalar_lea.sflag [#allocation5], 1
    %254 = vsyncpa %s253, 1
    %255 = vsyncpa [#allocation8], 1
    %s256 = scalar_lea.sflag [#allocation8], 1
    %257 = vsyncpa %s256, 1
    %258 = vsyncpa [#allocation6], 1
    %s259 = scalar_lea.sflag [#allocation6], 1
    %260 = vsyncpa %s259, 1

</llo_original>
